<compile_context>
chip_gen: v5e
topology: v5e:2x2
jax: 0.10.0
libtpu: 0.0.40
codegen_flags: <defaults>
</compile_context>

<pallas_src>
import jax
import jax.numpy as jnp
from jax.experimental import pallas as pl
from jax.experimental.pallas import tpu as pltpu


def build_pe_table(max_seq_len: int, d_model: int) -> jnp.ndarray:
    """Parameter setup (glue, plain JAX) — reproduces the torch __init__ exactly."""
    assert d_model % 2 == 0
    i_seq = jnp.linspace(0.0, max_seq_len - 1, max_seq_len)
    j_seq = jnp.linspace(0.0, d_model - 2, d_model // 2)
    # torch.meshgrid (old default) == indexing='ij'
    pos, two_i = jnp.meshgrid(i_seq, j_seq, indexing="ij")
    arg = pos / (10000.0 ** (two_i / d_model))
    pe_2i = jnp.sin(arg)
    pe_2i_1 = jnp.cos(arg)
    pe = jnp.stack((pe_2i, pe_2i_1), axis=2).reshape(max_seq_len, d_model)
    return pe.astype(jnp.float32)


def _gather_kernel(t_ref, pe_ref, o_ref):
    # t_ref  : VMEM (TB, 1) int32   -- block of clamped indices
    # pe_ref : VMEM (L, D) float32  -- full PE table (constant block -> loaded once)
    # o_ref  : VMEM (TB, D) float32 -- output rows pe[t[b], :]
    tb = t_ref.shape[0]
    L = pe_ref.shape[0]
    idx = t_ref[...]                                              # (TB, 1)
    iota = jax.lax.broadcasted_iota(jnp.int32, (tb, L), 1)        # (TB, L)
    onehot = (iota == idx).astype(jnp.float32)                    # (TB, L), exact 0/1
    # One-hot row-select via MXU matmul; fp32 contract precision keeps it exact.
    o_ref[...] = jnp.dot(
        onehot,
        pe_ref[...],
        precision=jax.lax.Precision.HIGHEST,
        preferred_element_type=jnp.float32,
    ).astype(o_ref.dtype)


def positional_encoding(t: jnp.ndarray, pe: jnp.ndarray, *, block_b: int = 128) -> jnp.ndarray:
    """Embedding lookup: out[b, :] = pe[t[b], :]."""
    B = t.shape[0]
    L, D = pe.shape

    # Clamp to valid range: no runtime OOB check exists on TPU.
    t_idx = jnp.clip(t.astype(jnp.int32), 0, L - 1)

    # Sublane-aligned batch tile; pad B up to a multiple of the tile.
    TB = min(block_b, pl.cdiv(B, 8) * 8)
    B_pad = pl.cdiv(B, TB) * TB
    t2 = jnp.pad(t_idx, (0, B_pad - B)).reshape(B_pad, 1)  # padded rows -> index 0 (valid)

    grid = (B_pad // TB,)
    out = pl.pallas_call(
        _gather_kernel,
        out_shape=jax.ShapeDtypeStruct((B_pad, D), pe.dtype),
        grid_spec=pltpu.PrefetchScalarGridSpec(
            num_scalar_prefetch=0,
            grid=grid,
            in_specs=[
                pl.BlockSpec((TB, 1), lambda i: (i, 0)),   # indices, per batch tile
                pl.BlockSpec((L, D), lambda i: (0, 0)),    # whole table, constant block
            ],
            out_specs=pl.BlockSpec((TB, D), lambda i: (i, 0)),
        ),
        compiler_params=pltpu.CompilerParams(
            dimension_semantics=("parallel",),  # batch tiles shard across TCs on v7x
        ),
    )(t2, pe)
    return out[:B]


if __name__ == "__main__":
    max_seq_len = 16
    d_model = 32
    batch = 8

    pe = build_pe_table(max_seq_len, d_model)

    key = jax.random.PRNGKey(0)
    t = jax.random.randint(key, (batch,), 0, max_seq_len, dtype=jnp.int32)

    out = positional_encoding(t, pe)
    out = jax.block_until_ready(out)

    # reference: plain-JAX embedding lookup
    ref = pe[t]
    assert out.shape == (batch, d_model)
    assert out.dtype == jnp.float32
    assert jnp.allclose(out, ref, atol=1e-6), "mismatch vs reference gather"

    print("KERNEL_OK")
</pallas_src>

<mosaic_0001>
module attributes {stable_mosaic.version = 11 : i64} {
  func.func @_gather_kernel(%arg0: i32, %arg1: memref<8x1xi32, #tpu.memory_space<vmem>>, %arg2: memref<16x32xf32, #tpu.memory_space<vmem>>, %arg3: memref<8x32xf32, #tpu.memory_space<vmem>>) attributes {dimension_semantics = [#tpu.dimension_semantics<parallel>], iteration_bounds = array<i64: 1>, scalar_prefetch = 0 : i64, scratch_operands = 0 : i64, tpu.core_type = #tpu.core_type<tc>, window_params = [{transform_indices = @transform_0, window_bounds = array<i64: 8, 1>}, {pipeline_mode = #tpu.pipeline_mode<synchronous>, transform_indices = @transform_1, window_bounds = array<i64: 16, 32>}, {transform_indices = @transform_2, window_bounds = array<i64: 8, 32>}]} {
    %c0 = arith.constant 0 : index
    %c0_0 = arith.constant 0 : index
    %0 = vector.load %arg1[%c0, %c0_0] : memref<8x1xi32, #tpu.memory_space<vmem>>, vector<8x1xi32>
    %1 = tpu.iota {dimensions = array<i32: 1>} : vector<8x16xi32>
    %2 = vector.broadcast %0 : vector<8x1xi32> to vector<8x16xi32>
    %3 = arith.cmpi eq, %1, %2 : vector<8x16xi32>
    %4 = arith.extui %3 : vector<8x16xi1> to vector<8x16xi32>
    %5 = arith.sitofp %4 : vector<8x16xi32> to vector<8x16xf32>
    %c0_1 = arith.constant 0 : index
    %c0_2 = arith.constant 0 : index
    %6 = vector.load %arg2[%c0_1, %c0_2] : memref<16x32xf32, #tpu.memory_space<vmem>>, vector<16x32xf32>
    %cst = arith.constant dense<0.000000e+00> : vector<8x32xf32>
    %7 = tpu.matmul %5, %6, %cst {dimension_numbers = #tpu.dot_dimension_numbers<[1], [0], [0], [1], [0, 0, 1, 1], [], []>, precision = #tpu.contract_precision<fp32>} : vector<8x16xf32>, vector<16x32xf32>, vector<8x32xf32> -> vector<8x32xf32>
    %c0_3 = arith.constant 0 : index
    %c0_4 = arith.constant 0 : index
    %8 = vector.load %arg3[%c0_3, %c0_4] : memref<8x32xf32, #tpu.memory_space<vmem>>, vector<8x32xf32>
    tpu.vector_store %arg3[%c0_3, %c0_4], %7 {strides = array<i32>} : memref<8x32xf32, #tpu.memory_space<vmem>>, vector<8x32xf32>,
    return
  }
  func.func @transform_0(%arg0: i32) -> (i32, i32) {
    %c0_i32 = arith.constant 0 : i32
    %c0_i32_0 = arith.constant 0 : i32
    return %arg0, %c0_i32 : i32, i32
  }
  func.func @transform_1(%arg0: i32) -> (i32, i32) {
    %c0_i32 = arith.constant 0 : i32
    %c0_i32_0 = arith.constant 0 : i32
    %c0_i32_1 = arith.constant 0 : i32
    return %c0_i32, %c0_i32_0 : i32, i32
  }
  func.func @transform_2(%arg0: i32) -> (i32, i32) {
    %c0_i32 = arith.constant 0 : i32
    %c0_i32_0 = arith.constant 0 : i32
    return %arg0, %c0_i32 : i32, i32
  }
}

</mosaic_0001>

<llo_original>
// kernel: tpu_custom_call.1
$region0: #{tpu_custom_call.1}
  #allocation0 [shape = 'u32[]', space=smem, size = 0x4, offset = 0x4, fixed_abs, tag = 'smem constant byte address 0x4 - core index']
  #allocation1 [shape = 'u32[72,128]{1,0:T(1,128)}', space=vmem, size = 0x9000, scoped, tag = 'internal scratch']
  %s0 = inlined_call_operand.vmem [shape: s32[8,1], index: 0, kind: input, shape index: {}]
  %s1 = inlined_call_operand.hbm [shape: f32[16,32], index: 1, kind: input, shape index: {}]
  %s2 = inlined_call_operand.hbm [shape: f32[8,32], index: 2, kind: output, shape index: {}]
  %s3 = sld [smem:[#allocation0]]
  $region22: #{tpu_custom_call.1} parent=0
    _
  %s5 = ssub.s32 1, %s3
  %s6 = scalar_select 0, %s5, %s3
  $region1: #{tpu_custom_call.1} parent=0
    #allocation2 [shape = 'u8[8192]{0}', space=vmem, size = 0x2000, scoped, tag = 'input window, operand 1, single buffered']
    #allocation3 [shape = 's32[1]{0}', space=sflag, size = 0x4, scoped, tag = 'scoped memory for tpu_custom_call.1']
    #allocation4 [shape = 's32[1]{0}', space=sflag, size = 0x4, scoped, tag = 'scoped memory for tpu_custom_call.1']
    #allocation5 [shape = 'u8[4096]{0}', space=vmem, size = 0x1000, scoped, tag = 'output window, operand 0, single buffered']
    %7 = vsyncpa [#allocation3], 0
    %8 = vsyncpa [#allocation4], 0
    // Predicated region
    $region2: #{tpu_custom_call.1} parent=1 // pred_check
      _
    $region3: #{tpu_custom_call.1} parent=1 // pred_check_branch
      %10 = sbr.rel (0) target = $region5
    $region4: #{tpu_custom_call.1} parent=1 // pred_region
      _
    $region5: #{tpu_custom_call.1} parent=1 // pred_fallthru
      _
    // Predicated region
    $region6: #{tpu_custom_call.1} parent=1 // pred_check
      _
    $region7: #{tpu_custom_call.1} parent=1 // pred_check_branch
      %12 = sbr.rel (0) target = $region9
    $region8: #{tpu_custom_call.1} parent=1 // pred_region
      %14 = vsyncadd [#allocation3], 0
      %s15 = sshll.u32 %s1, 4
      %s16 = int_to_ptr.hbm [resolvable:$true] %s15
      %s17 = sshll.u32 [#allocation2], 4
      %s18 = int_to_ptr.vmem [resolvable:$true] %s17
      %23 = dma.hbm_to_vmem [thread:$0]  %s16, 256, %s18, [#allocation3], 128, 128, 8
    $region9: #{tpu_custom_call.1} parent=1 // pred_fallthru
      _
    // Predicated region
    $region10: #{tpu_custom_call.1} parent=1 // pred_check
      _
    $region11: #{tpu_custom_call.1} parent=1 // pred_check_branch
      %25 = sbr.rel (0) target = $region13
    $region12: #{tpu_custom_call.1} parent=1 // pred_region
      %27 = dma.done [#allocation3], 256
    $region13: #{tpu_custom_call.1} parent=1 // pred_fallthru
      _
    %v28 = vld [vmem:[%s0] sm:$0xff]
    %v29 = vlaneseq
    %v30 = vand.u32 %v29, 127
    %31 = vset.pattern.permute.xlu0 0
    %32 = vperm.xlu0 %31, %v28
    %v33 = vpop.permute.xlu0 %32
    %vm34 = vcmp.eq.s32.totalorder %v30, %v33
    %v35 = vsel %vm34, 1, 0
    %v36 = vcvt.s32.f32 %v35
    %v37 = vld [vmem:[#allocation2] sm:$0xff]
    %v38 = vld [vmem:[#allocation2 + $0x8] sm:$0xff]
    %vm39 = vcmask 130048
    %v41 = vsel %vm39, %v36, 0
    %43 = vmatpush.msra.mxu0 0.0
    %44 = vmatpush.msra.mxu0 0.0
    %45 = vmatpush.msra.mxu0 0.0
    %46 = vmatpush.msra.mxu0 0.0
    %47 = vmatpush.msra.mxu0 0.0
    %48 = vmatpush.msra.mxu0 0.0
    %49 = vmatpush.msra.mxu0 0.0
    %50 = vmatpush.msra.mxu0 0.0
    %51 = vmatpush.msra.mxu0 0.0
    %52 = vmatpush.msra.mxu0 0.0
    %53 = vmatpush.msra.mxu0 0.0
    %54 = vmatpush.msra.mxu0 0.0
    %55 = vmatpush.msra.mxu0 0.0
    %56 = vmatpush.msra.mxu0 0.0
    %v57 = vand.u32 %v38, 4294901760
    %58 = vmatpush.msra.mxu0 %v57
    %v59 = vand.u32 %v37, 4294901760
    %60 = vmatpush.msra.mxu0 %v59
    %v61 = vand.u32 %v41, 4294901760
    %v62 = vsub.f32 %v41, %v61
    %v63 = vand.u32 %v62, 4294901760
    %v64 = vsub.f32 %v62, %v63
    %v65 = vand.u32 %v64, 4294901760
    %66 = vmatmul.f32.gmra.mxu0 %v65
    %v67 = vpop.f32.mrf.mxu0
    %v68 = vadd.f32 0.0, %v67
    %69 = vdwg.mxu0
    %70 = vmatpush.msra.mxu0 0.0
    %71 = vmatpush.msra.mxu0 0.0
    %72 = vmatpush.msra.mxu0 0.0
    %73 = vmatpush.msra.mxu0 0.0
    %74 = vmatpush.msra.mxu0 0.0
    %75 = vmatpush.msra.mxu0 0.0
    %76 = vmatpush.msra.mxu0 0.0
    %77 = vmatpush.msra.mxu0 0.0
    %78 = vmatpush.msra.mxu0 0.0
    %79 = vmatpush.msra.mxu0 0.0
    %80 = vmatpush.msra.mxu0 0.0
    %81 = vmatpush.msra.mxu0 0.0
    %82 = vmatpush.msra.mxu0 0.0
    %83 = vmatpush.msra.mxu0 0.0
    %v84 = vand.u32 %v38, 4294901760
    %v85 = vsub.f32 %v38, %v84
    %v86 = vand.u32 %v85, 4294901760
    %v87 = vsub.f32 %v85, %v86
    %v88 = vand.u32 %v87, 4294901760
    %89 = vmatpush.msra.mxu0 %v88
    %v90 = vand.u32 %v37, 4294901760
    %v91 = vsub.f32 %v37, %v90
    %v92 = vand.u32 %v91, 4294901760
    %v93 = vsub.f32 %v91, %v92
    %v94 = vand.u32 %v93, 4294901760
    %95 = vmatpush.msra.mxu0 %v94
    %v96 = vand.u32 %v41, 4294901760
    %97 = vmatmul.f32.gmra.mxu0 %v96
    %v98 = vpop.f32.mrf.mxu0
    %v99 = vadd.f32 %v68, %v98
    %100 = vdwg.mxu0
    %101 = vmatpush.msra.mxu0 0.0
    %102 = vmatpush.msra.mxu0 0.0
    %103 = vmatpush.msra.mxu0 0.0
    %104 = vmatpush.msra.mxu0 0.0
    %105 = vmatpush.msra.mxu0 0.0
    %106 = vmatpush.msra.mxu0 0.0
    %107 = vmatpush.msra.mxu0 0.0
    %108 = vmatpush.msra.mxu0 0.0
    %109 = vmatpush.msra.mxu0 0.0
    %110 = vmatpush.msra.mxu0 0.0
    %111 = vmatpush.msra.mxu0 0.0
    %112 = vmatpush.msra.mxu0 0.0
    %113 = vmatpush.msra.mxu0 0.0
    %114 = vmatpush.msra.mxu0 0.0
    %v115 = vand.u32 %v38, 4294901760
    %v116 = vsub.f32 %v38, %v115
    %117 = vmatpush.msra.mxu0 %v116
    %v118 = vand.u32 %v37, 4294901760
    %v119 = vsub.f32 %v37, %v118
    %120 = vmatpush.msra.mxu0 %v119
    %v121 = vand.u32 %v41, 4294901760
    %v122 = vsub.f32 %v41, %v121
    %123 = vmatmul.f32.gmra.mxu0 %v122
    %v124 = vpop.f32.mrf.mxu0
    %v125 = vadd.f32 %v99, %v124
    %126 = vdwg.mxu0
    %127 = vmatpush.msra.mxu0 0.0
    %128 = vmatpush.msra.mxu0 0.0
    %129 = vmatpush.msra.mxu0 0.0
    %130 = vmatpush.msra.mxu0 0.0
    %131 = vmatpush.msra.mxu0 0.0
    %132 = vmatpush.msra.mxu0 0.0
    %133 = vmatpush.msra.mxu0 0.0
    %134 = vmatpush.msra.mxu0 0.0
    %135 = vmatpush.msra.mxu0 0.0
    %136 = vmatpush.msra.mxu0 0.0
    %137 = vmatpush.msra.mxu0 0.0
    %138 = vmatpush.msra.mxu0 0.0
    %139 = vmatpush.msra.mxu0 0.0
    %140 = vmatpush.msra.mxu0 0.0
    %v141 = vand.u32 %v38, 4294901760
    %142 = vmatpush.msra.mxu0 %v141
    %v143 = vand.u32 %v37, 4294901760
    %144 = vmatpush.msra.mxu0 %v143
    %v145 = vand.u32 %v41, 4294901760
    %v146 = vsub.f32 %v41, %v145
    %v147 = vand.u32 %v146, 4294901760
    %148 = vmatmul.f32.gmra.mxu0 %v147
    %v149 = vpop.f32.mrf.mxu0
    %v150 = vadd.f32 %v125, %v149
    %151 = vdwg.mxu0
    %152 = vmatpush.msra.mxu0 0.0
    %153 = vmatpush.msra.mxu0 0.0
    %154 = vmatpush.msra.mxu0 0.0
    %155 = vmatpush.msra.mxu0 0.0
    %156 = vmatpush.msra.mxu0 0.0
    %157 = vmatpush.msra.mxu0 0.0
    %158 = vmatpush.msra.mxu0 0.0
    %159 = vmatpush.msra.mxu0 0.0
    %160 = vmatpush.msra.mxu0 0.0
    %161 = vmatpush.msra.mxu0 0.0
    %162 = vmatpush.msra.mxu0 0.0
    %163 = vmatpush.msra.mxu0 0.0
    %164 = vmatpush.msra.mxu0 0.0
    %165 = vmatpush.msra.mxu0 0.0
    %v166 = vand.u32 %v38, 4294901760
    %v167 = vsub.f32 %v38, %v166
    %v168 = vand.u32 %v167, 4294901760
    %169 = vmatpush.msra.mxu0 %v168
    %v170 = vand.u32 %v37, 4294901760
    %v171 = vsub.f32 %v37, %v170
    %v172 = vand.u32 %v171, 4294901760
    %173 = vmatpush.msra.mxu0 %v172
    %v174 = vand.u32 %v41, 4294901760
    %175 = vmatmul.f32.gmra.mxu0 %v174
    %v176 = vpop.f32.mrf.mxu0
    %v177 = vadd.f32 %v150, %v176
    %178 = vdwg.mxu0
    %179 = vmatpush.msra.mxu0 0.0
    %180 = vmatpush.msra.mxu0 0.0
    %181 = vmatpush.msra.mxu0 0.0
    %182 = vmatpush.msra.mxu0 0.0
    %183 = vmatpush.msra.mxu0 0.0
    %184 = vmatpush.msra.mxu0 0.0
    %185 = vmatpush.msra.mxu0 0.0
    %186 = vmatpush.msra.mxu0 0.0
    %187 = vmatpush.msra.mxu0 0.0
    %188 = vmatpush.msra.mxu0 0.0
    %189 = vmatpush.msra.mxu0 0.0
    %190 = vmatpush.msra.mxu0 0.0
    %191 = vmatpush.msra.mxu0 0.0
    %192 = vmatpush.msra.mxu0 0.0
    %v193 = vand.u32 %v38, 4294901760
    %194 = vmatpush.msra.mxu0 %v193
    %v195 = vand.u32 %v37, 4294901760
    %196 = vmatpush.msra.mxu0 %v195
    %v197 = vand.u32 %v41, 4294901760
    %198 = vmatmul.f32.gmra.mxu0 %v197
    %v199 = vpop.f32.mrf.mxu0
    %v200 = vadd.f32 %v177, %v199
    %201 = vdwg.mxu0
    %vm202 = vcmask 261120
    %203 = vst.msk [vmem:[#allocation5] sm:$0xff] %vm202, %v200
    // Predicated region
    $region14: #{tpu_custom_call.1} parent=1 // pred_check
      _
    $region15: #{tpu_custom_call.1} parent=1 // pred_check_branch
      %205 = sbr.rel (0) target = $region17
    $region16: #{tpu_custom_call.1} parent=1 // pred_region
      %207 = vsyncadd [#allocation4], 0
      %s209 = sshll.u32 [#allocation5], 4
      %s210 = int_to_ptr.vmem [resolvable:$true] %s209
      %s211 = sshll.u32 %s2, 4
      %s212 = int_to_ptr.hbm [resolvable:$true] %s211
      %214 = dma.vmem_to_hbm [thread:$0]  %s210, 128, %s212, [#allocation4]
    $region17: #{tpu_custom_call.1} parent=1 // pred_fallthru
      _
    // Predicated region
    $region18: #{tpu_custom_call.1} parent=1 // pred_check
      _
    $region19: #{tpu_custom_call.1} parent=1 // pred_check_branch
      %216 = sbr.rel (0) target = $region21
    $region20: #{tpu_custom_call.1} parent=1 // pred_region
      %218 = dma.done [#allocation4], 128
    $region21: #{tpu_custom_call.1} parent=1 // pred_fallthru
      _
    %219 = vsyncpa [#allocation3], 1
    %220 = vsyncpa [#allocation4], 1

</llo_original>
